<compile_context>
chip_gen: v5e
topology: v5e:2x2
jax: 0.10.0
libtpu: 0.0.40
codegen_flags: <defaults>
</compile_context>

<pallas_src>
import functools

import jax
import jax.numpy as jnp
from jax.experimental import pallas as pl
from jax.experimental.pallas import tpu as pltpu


def _round_up(n, m):
    return ((n + m - 1) // m) * m


def _vmem_capacity_bytes():
    """Physical VMEM per core (128 MiB v5e/v6e, 64 MiB per-TC v7x)."""
    try:
        return int(pltpu.get_tpu_info().vmem_capacity_bytes)
    except Exception:  # info query unavailable -> assume the smallest (v7x) part
        return 64 * 2**20


def _tower_kernel(x_ref, w1_ref, b1_ref, w2_ref, b2_ref, o_ref, acc_ref,
                  *, compute_dtype):
    """One (batch-tile i, hidden-slice k) step of relu(x@W1+b1)@W2 + b2."""
    k = pl.program_id(1)

    @pl.when(k == 0)
    def _init():
        acc_ref[...] = jnp.zeros_like(acc_ref)

    # In-kernel cast of the streamed operand (free VPU filler in a mem-bound
    # kernel) -- avoids a separate wrapper-side convert pass over x in HBM.
    x = x_ref[...].astype(compute_dtype)

    # Hidden slice k: relu(x @ W1[:, k] + b1[k]); MXU with f32 accumulation,
    # bias + ReLU in f32 on the VPU (v5e has no bf16 elementwise datapath).
    h = jnp.dot(x, w1_ref[...], preferred_element_type=jnp.float32)
    h = jnp.maximum(h + b1_ref[...], 0.0)

    # Partial second matmul over this hidden slice; accumulate in f32 VMEM.
    acc_ref[...] += jnp.dot(h.astype(w2_ref.dtype), w2_ref[...],
                            preferred_element_type=jnp.float32)

    @pl.when(k == pl.num_programs(1) - 1)
    def _finalize():
        o_ref[...] = (acc_ref[...] + b2_ref[...]).astype(o_ref.dtype)


def structured_tower(x, w1, b1, w2, b2, *, tm=None, compute_dtype=jnp.bfloat16):
    """Fused MLP tower: relu(x @ w1 + b1) @ w2 + b2.

    x: (B, D_in); w1: (D_in, H); b1: (H,); w2: (H, H); b2: (H,)
    (weights stored transposed vs. PyTorch nn.Linear). Output dtype == x.dtype.
    """
    B, D_in = x.shape
    H = w1.shape[1]
    out_dtype = x.dtype
    itemsize = jnp.dtype(compute_dtype).itemsize

    # --- batch tile: large (512-1024) tiles at big B so per-step bytes dwarf the
    # fixed per-step overhead; >=2 grid steps when B >= 256 keeps both v7x TCs busy.
    if tm is None:
        if B >= 2048:
            tm = 1024
        elif B >= 1024:
            tm = 512
        elif B >= 256:
            tm = _round_up(pl.cdiv(B, 2), 128)   # exactly 2 parallel grid steps
        else:
            tm = _round_up(B, 8)                 # tiny batch: one aligned tile
    B_pad = _round_up(B, tm)
    nb = B_pad // tm

    # --- hidden-dim tiling of the second matmul: stream W1/W2 in slices when W2
    # would not sit comfortably in VMEM (matters on v7x's 64 MiB); otherwise keep
    # the weights grid-invariant (Pallas does not re-DMA invariant blocks).
    tk = H
    if H * H * itemsize > 16 * 2**20:
        for cand in (1024, 512, 256, 128):
            if H % cand == 0:
                tk = cand
                break
    nk = pl.cdiv(H, tk)

    # No feature padding: D_in / H / tk==H block dims are full-extent. Only the
    # batch dim is padded up to the tile, and x keeps its original dtype (cast
    # happens inside the kernel).
    x_p = x if B_pad == B else jnp.pad(x, ((0, B_pad - B), (0, 0)))
    w1_p = w1.astype(compute_dtype)
    w2_p = w2.astype(compute_dtype)
    b1_p = b1.reshape(1, H).astype(jnp.float32)
    b2_p = b2.reshape(1, H).astype(jnp.float32)

    # --- advisory cost estimate so XLA can schedule around this custom call ----
    weight_bytes = (D_in * H + H * H) * itemsize + 2 * H * 4
    bytes_accessed = int(
        B_pad * D_in * x.dtype.itemsize                      # x read
        + weight_bytes * (nb if nk > 1 else 1)               # weights (re-read if streamed)
        + B_pad * H * jnp.dtype(out_dtype).itemsize)         # output write
    cost = pl.CostEstimate(flops=2 * B_pad * H * (D_in + H),
                           transcendentals=0,
                           bytes_accessed=bytes_accessed)

    # --- scoped-VMEM limit: raise when the footprint exceeds the smallest default
    # scoped limit (~16 MiB on v5e); cap below physical per-core VMEM (v7x-safe).
    vmem_needed = (2 * (D_in * tk + tk * H) * itemsize            # W1/W2 blocks (2 bufs)
                   + 2 * H * 4                                    # biases
                   + 2 * tm * D_in * x.dtype.itemsize             # x tiles (2 bufs)
                   + 2 * tm * H * jnp.dtype(out_dtype).itemsize   # out tiles (2 bufs)
                   + tm * H * 4                                   # f32 accumulator
                   + tm * tk * 4)                                 # f32 hidden slice
    vmem_limit_bytes = None
    if vmem_needed > 12 * 2**20:
        cap = _vmem_capacity_bytes()
        vmem_limit_bytes = min(int(vmem_needed * 3 // 2), cap - 16 * 2**20)

    out_p = pl.pallas_call(
        functools.partial(_tower_kernel, compute_dtype=compute_dtype),
        out_shape=jax.ShapeDtypeStruct((B_pad, H), out_dtype),
        grid=(nb, nk),
        in_specs=[
            pl.BlockSpec((tm, D_in), lambda i, k: (i, 0)),   # x: streamed over batch
            pl.BlockSpec((D_in, tk), lambda i, k: (0, k)),   # W1 hidden slice
            pl.BlockSpec((1, tk), lambda i, k: (0, k)),      # b1 hidden slice
            pl.BlockSpec((tk, H), lambda i, k: (k, 0)),      # W2 hidden slice
            pl.BlockSpec((1, H), lambda i, k: (0, 0)),       # b2 (invariant)
        ],
        out_specs=pl.BlockSpec((tm, H), lambda i, k: (i, 0)),
        scratch_shapes=[pltpu.VMEM((tm, H), jnp.float32)],
        compiler_params=pltpu.CompilerParams(
            dimension_semantics=("parallel", "arbitrary"),
            vmem_limit_bytes=vmem_limit_bytes,
        ),
        cost_estimate=cost,
    )(x_p, w1_p, b1_p, w2_p, b2_p)

    return out_p if B_pad == B else out_p[:B]


def structured_tower_ref(x, w1, b1, w2, b2):
    """Pure-JAX reference matching the PyTorch forward pass."""
    h = jnp.maximum(x @ w1 + b1, 0.0)
    return h @ w2 + b2


def _make_params(key, d_in, h):
    k1, k2, k3, k4 = jax.random.split(key, 4)
    w1 = jax.random.uniform(k1, (d_in, h), minval=-1.0, maxval=1.0,
                            dtype=jnp.float32) / jnp.sqrt(d_in)
    b1 = jax.random.uniform(k2, (h,), minval=-1.0, maxval=1.0,
                            dtype=jnp.float32) / jnp.sqrt(d_in)
    w2 = jax.random.uniform(k3, (h, h), minval=-1.0, maxval=1.0,
                            dtype=jnp.float32) / jnp.sqrt(h)
    b2 = jax.random.uniform(k4, (h,), minval=-1.0, maxval=1.0,
                            dtype=jnp.float32) / jnp.sqrt(h)
    return w1, b1, w2, b2


if __name__ == "__main__":
    # Shapes consistent with the module: input_dim=16, hidden_dim=32.
    D_IN, H = 16, 32
    key = jax.random.PRNGKey(0)
    kx, kp, kx2 = jax.random.split(key, 3)
    w1, b1, w2, b2 = _make_params(kp, D_IN, H)

    # --- native tiny batch (single tile, single hidden slice) -----------------
    B = 8
    x = jax.random.normal(kx, (B, D_IN), dtype=jnp.float32)
    ref = structured_tower_ref(x, w1, b1, w2, b2)

    out_exact = structured_tower(x, w1, b1, w2, b2, compute_dtype=jnp.float32)
    out_exact = jax.block_until_ready(out_exact)
    assert out_exact.shape == (B, H) and out_exact.dtype == x.dtype
    assert jnp.allclose(out_exact, ref, atol=1e-4, rtol=1e-4), "f32 path mismatch"

    out_fast = structured_tower(x, w1, b1, w2, b2)   # bf16 MXU, f32 accumulation
    out_fast = jax.block_until_ready(out_fast)
    assert out_fast.shape == (B, H)
    assert jnp.allclose(out_fast, ref, atol=5e-2, rtol=5e-2), "bf16 path mismatch"

    # --- bigger, non-tile-divisible batch: exercises batch padding, the 2-step
    # parallel grid and the pl.when-gated accumulator path ----------------------
    B2 = 300
    x2 = jax.random.normal(kx2, (B2, D_IN), dtype=jnp.float32)
    ref2 = structured_tower_ref(x2, w1, b1, w2, b2)
    out2 = structured_tower(x2, w1, b1, w2, b2, compute_dtype=jnp.float32)
    out2 = jax.block_until_ready(out2)
    assert out2.shape == (B2, H)
    assert jnp.allclose(out2, ref2, atol=1e-4, rtol=1e-4), "multi-tile mismatch"

    print("KERNEL_OK")
</pallas_src>

<mosaic_0001>
module attributes {stable_mosaic.version = 11 : i64} {
  func.func @_tower_kernel(%arg0: i32, %arg1: i32, %arg2: memref<8x16xf32, #tpu.memory_space<vmem>>, %arg3: memref<16x32xf32, #tpu.memory_space<vmem>>, %arg4: memref<1x32xf32, #tpu.memory_space<vmem>>, %arg5: memref<32x32xf32, #tpu.memory_space<vmem>>, %arg6: memref<1x32xf32, #tpu.memory_space<vmem>>, %arg7: memref<8x32xf32, #tpu.memory_space<vmem>>, %arg8: memref<8x32xf32, #tpu.memory_space<vmem>>) attributes {dimension_semantics = [#tpu.dimension_semantics<parallel>, #tpu.dimension_semantics<arbitrary>], iteration_bounds = array<i64: 1, 1>, scalar_prefetch = 0 : i64, scratch_operands = 1 : i64, tpu.core_type = #tpu.core_type<tc>, window_params = [{transform_indices = @transform_0, window_bounds = array<i64: 8, 16>}, {transform_indices = @transform_1, window_bounds = array<i64: 16, 32>}, {transform_indices = @transform_2, window_bounds = array<i64: 1, 32>}, {transform_indices = @transform_3, window_bounds = array<i64: 32, 32>}, {pipeline_mode = #tpu.pipeline_mode<synchronous>, transform_indices = @transform_4, window_bounds = array<i64: 1, 32>}, {transform_indices = @transform_5, window_bounds = array<i64: 8, 32>}]} {
    %c0_i32 = arith.constant 0 : i32
    %0 = arith.cmpi eq, %arg1, %c0_i32 : i32
    %1 = arith.extui %0 : i1 to i32
    %c0_i32_0 = arith.constant 0 : i32
    %2 = arith.cmpi ne, %1, %c0_i32_0 : i32
    scf.if %2 {
      %cst_16 = arith.constant 0.000000e+00 : f32
      %19 = vector.broadcast %cst_16 : f32 to vector<8x32xf32>
      %c0_17 = arith.constant 0 : index
      %c0_18 = arith.constant 0 : index
      %20 = vector.load %arg8[%c0_17, %c0_18] : memref<8x32xf32, #tpu.memory_space<vmem>>, vector<8x32xf32>
      tpu.vector_store %arg8[%c0_17, %c0_18], %19 {strides = array<i32>} : memref<8x32xf32, #tpu.memory_space<vmem>>, vector<8x32xf32>,
    } else {
    }
    %c0 = arith.constant 0 : index
    %c0_1 = arith.constant 0 : index
    %3 = vector.load %arg2[%c0, %c0_1] : memref<8x16xf32, #tpu.memory_space<vmem>>, vector<8x16xf32>
    %c0_2 = arith.constant 0 : index
    %c0_3 = arith.constant 0 : index
    %4 = vector.load %arg3[%c0_2, %c0_3] : memref<16x32xf32, #tpu.memory_space<vmem>>, vector<16x32xf32>
    %cst = arith.constant dense<0.000000e+00> : vector<8x32xf32>
    %5 = tpu.matmul %3, %4, %cst {dimension_numbers = #tpu.dot_dimension_numbers<[1], [0], [0], [1], [0, 0, 1, 1], [], []>} : vector<8x16xf32>, vector<16x32xf32>, vector<8x32xf32> -> vector<8x32xf32>
    %c0_4 = arith.constant 0 : index
    %c0_5 = arith.constant 0 : index
    %6 = vector.load %arg4[%c0_4, %c0_5] : memref<1x32xf32, #tpu.memory_space<vmem>>, vector<1x32xf32>
    %7 = vector.broadcast %6 : vector<1x32xf32> to vector<8x32xf32>
    %8 = arith.addf %5, %7 : vector<8x32xf32>
    %cst_6 = arith.constant 0.000000e+00 : f32
    %9 = vector.broadcast %cst_6 : f32 to vector<8x32xf32>
    %10 = arith.maximumf %8, %9 : vector<8x32xf32>
    %c0_7 = arith.constant 0 : index
    %c0_8 = arith.constant 0 : index
    %11 = vector.load %arg8[%c0_7, %c0_8] : memref<8x32xf32, #tpu.memory_space<vmem>>, vector<8x32xf32>
    %c0_9 = arith.constant 0 : index
    %c0_10 = arith.constant 0 : index
    %12 = vector.load %arg5[%c0_9, %c0_10] : memref<32x32xf32, #tpu.memory_space<vmem>>, vector<32x32xf32>
    %cst_11 = arith.constant dense<0.000000e+00> : vector<8x32xf32>
    %13 = tpu.matmul %10, %12, %cst_11 {dimension_numbers = #tpu.dot_dimension_numbers<[1], [0], [0], [1], [0, 0, 1, 1], [], []>} : vector<8x32xf32>, vector<32x32xf32>, vector<8x32xf32> -> vector<8x32xf32>
    %14 = arith.addf %11, %13 : vector<8x32xf32>
    %c0_12 = arith.constant 0 : index
    %c0_13 = arith.constant 0 : index
    %15 = vector.load %arg8[%c0_12, %c0_13] : memref<8x32xf32, #tpu.memory_space<vmem>>, vector<8x32xf32>
    tpu.vector_store %arg8[%c0_12, %c0_13], %14 {strides = array<i32>} : memref<8x32xf32, #tpu.memory_space<vmem>>, vector<8x32xf32>,
    %c0_i32_14 = arith.constant 0 : i32
    %16 = arith.cmpi eq, %arg1, %c0_i32_14 : i32
    %17 = arith.extui %16 : i1 to i32
    %c0_i32_15 = arith.constant 0 : i32
    %18 = arith.cmpi ne, %17, %c0_i32_15 : i32
    scf.if %18 {
      %c0_16 = arith.constant 0 : index
      %c0_17 = arith.constant 0 : index
      %19 = vector.load %arg8[%c0_16, %c0_17] : memref<8x32xf32, #tpu.memory_space<vmem>>, vector<8x32xf32>
      %c0_18 = arith.constant 0 : index
      %c0_19 = arith.constant 0 : index
      %20 = vector.load %arg6[%c0_18, %c0_19] : memref<1x32xf32, #tpu.memory_space<vmem>>, vector<1x32xf32>
      %21 = vector.broadcast %20 : vector<1x32xf32> to vector<8x32xf32>
      %22 = arith.addf %19, %21 : vector<8x32xf32>
      %c0_20 = arith.constant 0 : index
      %c0_21 = arith.constant 0 : index
      %23 = vector.load %arg7[%c0_20, %c0_21] : memref<8x32xf32, #tpu.memory_space<vmem>>, vector<8x32xf32>
      tpu.vector_store %arg7[%c0_20, %c0_21], %22 {strides = array<i32>} : memref<8x32xf32, #tpu.memory_space<vmem>>, vector<8x32xf32>,
    } else {
    }
    return
  }
  func.func @transform_0(%arg0: i32, %arg1: i32) -> (i32, i32) {
    %c0_i32 = arith.constant 0 : i32
    %c0_i32_0 = arith.constant 0 : i32
    return %arg0, %c0_i32 : i32, i32
  }
  func.func @transform_1(%arg0: i32, %arg1: i32) -> (i32, i32) {
    %c0_i32 = arith.constant 0 : i32
    %c0_i32_0 = arith.constant 0 : i32
    return %c0_i32, %arg1 : i32, i32
  }
  func.func @transform_2(%arg0: i32, %arg1: i32) -> (i32, i32) {
    %c0_i32 = arith.constant 0 : i32
    %c0_i32_0 = arith.constant 0 : i32
    return %c0_i32, %arg1 : i32, i32
  }
  func.func @transform_3(%arg0: i32, %arg1: i32) -> (i32, i32) {
    %c0_i32 = arith.constant 0 : i32
    %c0_i32_0 = arith.constant 0 : i32
    return %arg1, %c0_i32 : i32, i32
  }
  func.func @transform_4(%arg0: i32, %arg1: i32) -> (i32, i32) {
    %c0_i32 = arith.constant 0 : i32
    %c0_i32_0 = arith.constant 0 : i32
    %c0_i32_1 = arith.constant 0 : i32
    return %c0_i32, %c0_i32_0 : i32, i32
  }
  func.func @transform_5(%arg0: i32, %arg1: i32) -> (i32, i32) {
    %c0_i32 = arith.constant 0 : i32
    %c0_i32_0 = arith.constant 0 : i32
    return %arg0, %c0_i32 : i32, i32
  }
}

</mosaic_0001>

<llo_original>
// kernel: tpu_custom_call.1
$region0: #{tpu_custom_call.1}
  #allocation0 [shape = 'u32[]', space=smem, size = 0x4, offset = 0x4, fixed_abs, tag = 'smem constant byte address 0x4 - core index']
  #allocation1 [shape = 'u32[72,128]{1,0:T(1,128)}', space=vmem, size = 0x9000, scoped, tag = 'internal scratch']
  #allocation2 [shape = 'f32[8,32]{1,0:T(8,128)}', space=vmem, size = 0x1000, scoped, tag = 'scratch operand']
  %s0 = inlined_call_operand.hbm [shape: f32[8,16], index: 0, kind: input, shape index: {}]
  %s1 = inlined_call_operand.hbm [shape: f32[16,32], index: 1, kind: input, shape index: {}]
  %s2 = inlined_call_operand.vmem [shape: f32[1,32], index: 2, kind: input, shape index: {}]
  %s3 = inlined_call_operand.hbm [shape: f32[32,32], index: 3, kind: input, shape index: {}]
  %s4 = inlined_call_operand.vmem [shape: f32[1,32], index: 4, kind: input, shape index: {}]
  %s5 = inlined_call_operand.hbm [shape: f32[8,32], index: 5, kind: output, shape index: {}]
  %s6 = sld [smem:[#allocation0]]
  $region50: #{tpu_custom_call.1} parent=0
    _
  %s8 = ssub.s32 1, %s6
  %s9 = scalar_select 0, %s8, %s6
  $region1: #{tpu_custom_call.1} parent=0
    #allocation3 [shape = 'u8[4096]{0}', space=vmem, size = 0x1000, scoped, tag = 'input window, operand 0, single buffered']
    #allocation4 [shape = 's32[1]{0}', space=sflag, size = 0x4, scoped, tag = 'scoped memory for tpu_custom_call.1']
    #allocation5 [shape = 's32[1]{0}', space=sflag, size = 0x4, scoped, tag = 'scoped memory for tpu_custom_call.1']
    #allocation6 [shape = 'u8[8192]{0}', space=vmem, size = 0x2000, scoped, tag = 'input window, operand 1, single buffered']
    #allocation7 [shape = 's32[1]{0}', space=sflag, size = 0x4, scoped, tag = 'scoped memory for tpu_custom_call.1']
    #allocation8 [shape = 'u8[16384]{0}', space=vmem, size = 0x4000, scoped, tag = 'input window, operand 3, single buffered']
    #allocation9 [shape = 'u8[4096]{0}', space=vmem, size = 0x1000, scoped, tag = 'output window, operand 0, single buffered']
    %10 = vsyncpa [#allocation4], 0
    %11 = vsyncpa [#allocation7], 0
    %12 = vsyncpa [#allocation5], 0
    // Predicated region
    $region2: #{tpu_custom_call.1} parent=1 // pred_check
      _
    $region3: #{tpu_custom_call.1} parent=1 // pred_check_branch
      %14 = sbr.rel (0) target = $region5
    $region4: #{tpu_custom_call.1} parent=1 // pred_region
      %16 = vsyncadd [#allocation4], 0
      %s18 = sshll.u32 %s0, 4
      %s19 = int_to_ptr.hbm [resolvable:$true] %s18
      %s20 = sshll.u32 [#allocation3], 4
      %s21 = int_to_ptr.vmem [resolvable:$true] %s20
      %23 = dma.hbm_to_vmem [thread:$0]  %s19, 128, %s21, [#allocation4]
    $region5: #{tpu_custom_call.1} parent=1 // pred_fallthru
      _
    // Predicated region
    $region6: #{tpu_custom_call.1} parent=1 // pred_check
      _
    $region7: #{tpu_custom_call.1} parent=1 // pred_check_branch
      %25 = sbr.rel (0) target = $region9
    $region8: #{tpu_custom_call.1} parent=1 // pred_region
      %27 = vsyncadd [#allocation7], 0
      %s28 = sshll.u32 %s1, 4
      %s29 = int_to_ptr.hbm [resolvable:$true] %s28
      %s30 = sshll.u32 [#allocation6], 4
      %s31 = int_to_ptr.vmem [resolvable:$true] %s30
      %36 = dma.hbm_to_vmem [thread:$0]  %s29, 256, %s31, [#allocation7], 128, 128, 8
    $region9: #{tpu_custom_call.1} parent=1 // pred_fallthru
      _
    // Predicated region
    $region10: #{tpu_custom_call.1} parent=1 // pred_check
      _
    $region11: #{tpu_custom_call.1} parent=1 // pred_check_branch
      %38 = sbr.rel (0) target = $region13
    $region12: #{tpu_custom_call.1} parent=1 // pred_region
      _
    $region13: #{tpu_custom_call.1} parent=1 // pred_fallthru
      _
    // Predicated region
    $region14: #{tpu_custom_call.1} parent=1 // pred_check
      _
    $region15: #{tpu_custom_call.1} parent=1 // pred_check_branch
      %40 = sbr.rel (0) target = $region17
    $region16: #{tpu_custom_call.1} parent=1 // pred_region
      %42 = vsyncadd [#allocation7], 0
      %s43 = sshll.u32 %s3, 4
      %s44 = int_to_ptr.hbm [resolvable:$true] %s43
      %s45 = sshll.u32 [#allocation8], 4
      %s46 = int_to_ptr.vmem [resolvable:$true] %s45
      %51 = dma.hbm_to_vmem [thread:$0]  %s44, 512, %s46, [#allocation7], 128, 128, 8
    $region17: #{tpu_custom_call.1} parent=1 // pred_fallthru
      _
    // Predicated region
    $region18: #{tpu_custom_call.1} parent=1 // pred_check
      _
    $region19: #{tpu_custom_call.1} parent=1 // pred_check_branch
      %53 = sbr.rel (0) target = $region21
    $region20: #{tpu_custom_call.1} parent=1 // pred_region
      _
    $region21: #{tpu_custom_call.1} parent=1 // pred_fallthru
      _
    // Predicated region
    $region22: #{tpu_custom_call.1} parent=1 // pred_check
      _
    $region23: #{tpu_custom_call.1} parent=1 // pred_check_branch
      %55 = sbr.rel (0) target = $region25
    $region24: #{tpu_custom_call.1} parent=1 // pred_region
      %57 = dma.done [#allocation4], 128
    $region25: #{tpu_custom_call.1} parent=1 // pred_fallthru
      _
    // Predicated region
    $region26: #{tpu_custom_call.1} parent=1 // pred_check
      _
    $region27: #{tpu_custom_call.1} parent=1 // pred_check_branch
      %59 = sbr.rel (0) target = $region29
    $region28: #{tpu_custom_call.1} parent=1 // pred_region
      %61 = dma.done [#allocation7], 256
    $region29: #{tpu_custom_call.1} parent=1 // pred_fallthru
      _
    // Predicated region
    $region30: #{tpu_custom_call.1} parent=1 // pred_check
      _
    $region31: #{tpu_custom_call.1} parent=1 // pred_check_branch
      %63 = sbr.rel (0) target = $region33
    $region32: #{tpu_custom_call.1} parent=1 // pred_region
      %65 = dma.done [#allocation7], 512
    $region33: #{tpu_custom_call.1} parent=1 // pred_fallthru
      _
    %p66 = scmp.eq.s32.totalorder 0, 0
    // Predicated region
    $region34: #{tpu_custom_call.1} parent=1 // pred_check
      %p67 = pneg %p66
    $region35: #{tpu_custom_call.1} parent=1 // pred_check_branch
      %69 = sbr.rel (%p67) target = $region37
    $region36: #{tpu_custom_call.1} parent=1 // pred_region
      %vm70 = vcmask 261120
      %71 = vst.msk [vmem:[#allocation2] sm:$0xff] %vm70, 0.0
    $region37: #{tpu_custom_call.1} parent=1 // pred_fallthru
      _
    %v72 = vld [vmem:[#allocation3] sm:$0xff]
    %v73 = vld [vmem:[#allocation6] sm:$0xff]
    %v74 = vld [vmem:[#allocation6 + $0x8] sm:$0xff]
    %v75 = vld [vmem:[%s2] sm:$0x1]
    %v77 = vperm.slane %v75, 0
    %vm79 = vcmask 130048
    %v81 = vsel %vm79, %v72, 0
    %83 = vmatpush.msra.mxu0 0.0
    %84 = vmatpush.msra.mxu0 0.0
    %85 = vmatpush.msra.mxu0 0.0
    %86 = vmatpush.msra.mxu0 0.0
    %87 = vmatpush.msra.mxu0 0.0
    %88 = vmatpush.msra.mxu0 0.0
    %89 = vmatpush.msra.mxu0 0.0
    %90 = vmatpush.msra.mxu0 0.0
    %91 = vmatpush.msra.mxu0 0.0
    %92 = vmatpush.msra.mxu0 0.0
    %93 = vmatpush.msra.mxu0 0.0
    %94 = vmatpush.msra.mxu0 0.0
    %95 = vmatpush.msra.mxu0 0.0
    %96 = vmatpush.msra.mxu0 0.0
    %97 = vmatpush.msra.mxu0 %v74
    %98 = vmatpush.msra.mxu0 %v73
    %99 = vmatmul.f32.gmra.mxu0 %v81
    %v100 = vpop.f32.mrf.mxu0
    %v101 = vadd.f32 %v77, %v100
    %102 = vdwg.mxu0
    %v103 = vmax.f32 %v101, 0.0
    %v104 = vld [vmem:[#allocation2] sm:$0xff]
    %v105 = vld [vmem:[#allocation8] sm:$0xff]
    %v106 = vld [vmem:[#allocation8 + $0x8] sm:$0xff]
    %v107 = vld [vmem:[#allocation8 + $0x10] sm:$0xff]
    %v108 = vld [vmem:[#allocation8 + $0x18] sm:$0xff]
    %vm109 = vcmask 261120
    %v111 = vsel %vm109, %v103, 0
    %113 = vmatpush.msra.mxu0 0.0
    %114 = vmatpush.msra.mxu0 0.0
    %115 = vmatpush.msra.mxu0 0.0
    %116 = vmatpush.msra.mxu0 0.0
    %117 = vmatpush.msra.mxu0 0.0
    %118 = vmatpush.msra.mxu0 0.0
    %119 = vmatpush.msra.mxu0 0.0
    %120 = vmatpush.msra.mxu0 0.0
    %121 = vmatpush.msra.mxu0 0.0
    %122 = vmatpush.msra.mxu0 0.0
    %123 = vmatpush.msra.mxu0 0.0
    %124 = vmatpush.msra.mxu0 0.0
    %125 = vmatpush.msra.mxu0 %v108
    %126 = vmatpush.msra.mxu0 %v107
    %127 = vmatpush.msra.mxu0 %v106
    %128 = vmatpush.msra.mxu0 %v105
    %129 = vmatmul.f32.gmra.mxu0 %v111
    %v130 = vpop.f32.mrf.mxu0
    %v131 = vadd.f32 0.0, %v130
    %132 = vdwg.mxu0
    %v133 = vadd.f32 %v104, %v131
    %134 = vst.msk [vmem:[#allocation2] sm:$0xff] %vm109, %v133
    // Predicated region
    $region38: #{tpu_custom_call.1} parent=1 // pred_check
      %p135 = pneg %p66
    $region39: #{tpu_custom_call.1} parent=1 // pred_check_branch
      %137 = sbr.rel (%p135) target = $region41
    $region40: #{tpu_custom_call.1} parent=1 // pred_region
      %v138 = vld [vmem:[#allocation2] sm:$0xff]
      %v139 = vld [vmem:[%s4] sm:$0x1]
      %v141 = vperm.slane %v139, 0
      %v143 = vadd.f32 %v138, %v141
      %144 = vst.msk [vmem:[#allocation9] sm:$0xff] %vm109, %v143
    $region41: #{tpu_custom_call.1} parent=1 // pred_fallthru
      _
    // Predicated region
    $region42: #{tpu_custom_call.1} parent=1 // pred_check
      _
    $region43: #{tpu_custom_call.1} parent=1 // pred_check_branch
      %146 = sbr.rel (0) target = $region45
    $region44: #{tpu_custom_call.1} parent=1 // pred_region
      %148 = vsyncadd [#allocation5], 0
      %s150 = sshll.u32 [#allocation9], 4
      %s151 = int_to_ptr.vmem [resolvable:$true] %s150
      %s152 = sshll.u32 %s5, 4
      %s153 = int_to_ptr.hbm [resolvable:$true] %s152
      %155 = dma.vmem_to_hbm [thread:$0]  %s151, 128, %s153, [#allocation5]
    $region45: #{tpu_custom_call.1} parent=1 // pred_fallthru
      _
    // Predicated region
    $region46: #{tpu_custom_call.1} parent=1 // pred_check
      _
    $region47: #{tpu_custom_call.1} parent=1 // pred_check_branch
      %157 = sbr.rel (0) target = $region49
    $region48: #{tpu_custom_call.1} parent=1 // pred_region
      %159 = dma.done [#allocation5], 128
    $region49: #{tpu_custom_call.1} parent=1 // pred_fallthru
      _
    %160 = vsyncpa [#allocation4], 1
    %161 = vsyncpa [#allocation7], 1
    %162 = vsyncpa [#allocation5], 1

</llo_original>
